<compile_context>
chip_gen: v7x
topology: tpu7x:2x2x1
jax: 0.10.0
libtpu: 0.0.40
codegen_flags: <defaults>
</compile_context>

<pallas_src>
import functools

import jax
import jax.numpy as jnp
from jax.experimental import pallas as pl
from jax.experimental.pallas import tpu as pltpu

FEAT = 128                 # fixed by nn.Linear(128, 128) in the module
_MIN_SPLIT_ROWS = 512      # smallest problem worth splitting across 2 TCs


def _round_up(n, m):
    return ((n + m - 1) // m) * m


def highway_kernel(x_ref, w_ref, b_ref, o_ref, *, mxu_bf16):
    x = x_ref[...]                                              # (TM, 128)
    if mxu_bf16:
        # v5e: single-pass bf16 MXU operands instead of multi-pass f32 passes.
        y = jnp.dot(x.astype(jnp.bfloat16), w_ref[...].astype(jnp.bfloat16),
                    preferred_element_type=jnp.float32)
    else:
        y = jnp.dot(x, w_ref[...], preferred_element_type=jnp.float32)
    y = y + b_ref[...]                                          # (TM, 256)

    h = jnp.maximum(y[:, :FEAT], 0.0)                           # relu(H(x))
    # sigmoid(T(x)) with the reciprocal on the otherwise-idle EUP slot.
    t = pl.reciprocal(1.0 + jnp.exp(-y[:, FEAT:]), approx=True)
    # highway gate: h*t + x*(1-t)  ==  x + t*(h - x)   (one fewer VPU multiply)
    o_ref[...] = (x + t * (h - x)).astype(o_ref.dtype)


def fuse_highway_params(w_h, b_h, w_t, b_t):
    """Fuse two PyTorch-layout (out,in) Linear weights into one (in, 2*out) tile.

    Call once and reuse; rebuilding the 128 KiB fused weight per invocation is
    wasted HBM traffic when not under a single jit.
    """
    w_fused = jnp.concatenate([w_h.T, w_t.T], axis=1)               # (128, 256)
    b_fused = jnp.concatenate([b_h, b_t]).reshape(1, 2 * FEAT)      # (1, 256)
    return w_fused, b_fused


def highway_net(x, w_fused, b_fused, *, tile_m=4096, mxu_bf16=False,
                out_dtype=None):
    """x: (batch, seq, 128).  w_fused: (128, 256).  b_fused: (1, 256)."""
    B, S, F = x.shape
    assert F == FEAT
    rows = B * S
    out_dtype = x.dtype if out_dtype is None else out_dtype

    # Row tile: big (bandwidth-bound sweet spot), sublane aligned (multiple of
    # 8), never bigger than needed.  Split single-block medium problems so the
    # parallel grid axis can shard across v7x's two TensorCores.
    if rows <= 8:
        tm = rows
    else:
        tm = min(tile_m, _round_up(rows, 8))
        if rows >= 2 * _MIN_SPLIT_ROWS and pl.cdiv(rows, tm) < 2:
            tm = _round_up(pl.cdiv(rows, 2), 8)
    grid_m = pl.cdiv(rows, tm)         # ragged last block is masked by Pallas

    x2 = x.reshape(rows, FEAT)

    # VMEM request sized from actual need: double-buffered x/out tiles, the
    # (tm, 256) matmul intermediate, elementwise temporaries and the resident
    # fused weights, plus headroom -- capped at 32 MiB (v7x: 64 MiB physical).
    tile_bytes = tm * FEAT * 4
    vmem_need = (4 * tile_bytes              # x + out, double buffered
                 + 2 * tile_bytes            # (tm, 256) dot intermediate
                 + 4 * tile_bytes            # h / t / gate temporaries (bound)
                 + 4 * 2 * FEAT * FEAT * 4)  # fused weights + slack
    vmem_limit_bytes = int(min(32 << 20, max(16 << 20, vmem_need + (4 << 20))))

    cost = pl.CostEstimate(
        flops=2 * rows * FEAT * (2 * FEAT),
        transcendentals=2 * rows * FEAT,             # exp + reciprocal
        bytes_accessed=2 * rows * FEAT * 4 + 2 * FEAT * FEAT * 4,
    )

    out2 = pl.pallas_call(
        functools.partial(highway_kernel, mxu_bf16=mxu_bf16),
        out_shape=jax.ShapeDtypeStruct((rows, FEAT), out_dtype),
        grid_spec=pltpu.PrefetchScalarGridSpec(
            num_scalar_prefetch=0,
            grid=(grid_m,),
            in_specs=[
                pl.BlockSpec((tm, FEAT), lambda i: (i, 0)),         # x tile
                pl.BlockSpec((FEAT, 2 * FEAT), lambda i: (0, 0)),   # fused W (resident)
                pl.BlockSpec((1, 2 * FEAT), lambda i: (0, 0)),      # fused bias
            ],
            out_specs=pl.BlockSpec((tm, FEAT), lambda i: (i, 0)),
        ),
        compiler_params=pltpu.CompilerParams(
            dimension_semantics=("parallel",),
            vmem_limit_bytes=vmem_limit_bytes,
        ),
        cost_estimate=cost,
    )(x2, w_fused, b_fused)

    return out2.reshape(B, S, FEAT)


def highway_ref(x, w_h, b_h, w_t, b_t):
    """Pure-JAX reference mirroring the PyTorch forward."""
    h = jax.nn.relu(jnp.einsum("bsf,of->bso", x, w_h) + b_h)
    t = jax.nn.sigmoid(jnp.einsum("bsf,of->bso", x, w_t) + b_t)
    return h * t + x * (1.0 - t)


if __name__ == "__main__":
    key = jax.random.PRNGKey(0)
    k_x, k_wh, k_bh, k_wt, k_bt = jax.random.split(key, 5)

    batch, seq = 2, 8
    x = jax.random.normal(k_x, (batch, seq, FEAT), dtype=jnp.float32)

    # Deterministic parameter init (PyTorch nn.Linear layout: W (out, in), b (out,))
    bound = 1.0 / jnp.sqrt(FEAT)
    w_h = jax.random.uniform(k_wh, (FEAT, FEAT), jnp.float32, -bound, bound)
    b_h = jax.random.uniform(k_bh, (FEAT,), jnp.float32, -bound, bound)
    w_t = jax.random.uniform(k_wt, (FEAT, FEAT), jnp.float32, -bound, bound)
    b_t = jax.random.uniform(k_bt, (FEAT,), jnp.float32, -bound, bound)

    # Fuse once (hoisted weight prep), then run the kernel.
    w_fused, b_fused = fuse_highway_params(w_h, b_h, w_t, b_t)
    out = highway_net(x, w_fused, b_fused)
    out = jax.block_until_ready(out)

    ref = highway_ref(x, w_h, b_h, w_t, b_t)
    assert out.shape == (batch, seq, FEAT)
    # Tolerance covers the EUP approximate reciprocal in the sigmoid (~1e-3
    # relative on the gate) plus the reassociated x + t*(h - x) form.
    assert jnp.allclose(out, ref, atol=5e-3, rtol=5e-3), "mismatch vs reference"

    print("KERNEL_OK")
</pallas_src>

<mosaic_0001>
module attributes {stable_mosaic.version = 11 : i64} {
  func.func @highway_kernel(%arg0: i32, %arg1: memref<16x128xf32, #tpu.memory_space<vmem>>, %arg2: memref<128x256xf32, #tpu.memory_space<vmem>>, %arg3: memref<1x256xf32, #tpu.memory_space<vmem>>, %arg4: memref<16x128xf32, #tpu.memory_space<vmem>>) attributes {dimension_semantics = [#tpu.dimension_semantics<parallel>], iteration_bounds = array<i64: 1>, scalar_prefetch = 0 : i64, scratch_operands = 0 : i64, tpu.core_type = #tpu.core_type<tc>, window_params = [{transform_indices = @transform_0, window_bounds = array<i64: 16, 128>}, {pipeline_mode = #tpu.pipeline_mode<synchronous>, transform_indices = @transform_1, window_bounds = array<i64: 128, 256>}, {pipeline_mode = #tpu.pipeline_mode<synchronous>, transform_indices = @transform_2, window_bounds = array<i64: 1, 256>}, {transform_indices = @transform_3, window_bounds = array<i64: 16, 128>}]} {
    %c0 = arith.constant 0 : index
    %c0_0 = arith.constant 0 : index
    %0 = vector.load %arg1[%c0, %c0_0] : memref<16x128xf32, #tpu.memory_space<vmem>>, vector<16x128xf32>
    %c0_1 = arith.constant 0 : index
    %c0_2 = arith.constant 0 : index
    %1 = vector.load %arg2[%c0_1, %c0_2] : memref<128x256xf32, #tpu.memory_space<vmem>>, vector<128x256xf32>
    %cst = arith.constant dense<0.000000e+00> : vector<16x256xf32>
    %2 = tpu.matmul %0, %1, %cst {dimension_numbers = #tpu.dot_dimension_numbers<[1], [0], [0], [1], [0, 0, 1, 1], [], []>} : vector<16x128xf32>, vector<128x256xf32>, vector<16x256xf32> -> vector<16x256xf32>
    %c0_3 = arith.constant 0 : index
    %c0_4 = arith.constant 0 : index
    %3 = vector.load %arg3[%c0_3, %c0_4] : memref<1x256xf32, #tpu.memory_space<vmem>>, vector<1x256xf32>
    %4 = vector.broadcast %3 : vector<1x256xf32> to vector<16x256xf32>
    %5 = arith.addf %2, %4 : vector<16x256xf32>
    %6 = vector.extract_strided_slice %5 {offsets = [0, 0], sizes = [16, 128], strides = [1, 1]} : vector<16x256xf32> to vector<16x128xf32>
    %cst_5 = arith.constant 0.000000e+00 : f32
    %7 = vector.broadcast %cst_5 : f32 to vector<16x128xf32>
    %8 = arith.maximumf %6, %7 : vector<16x128xf32>
    %9 = vector.extract_strided_slice %5 {offsets = [0, 128], sizes = [16, 128], strides = [1, 1]} : vector<16x256xf32> to vector<16x128xf32>
    %cst_6 = arith.constant 0.000000e+00 : f32
    %10 = vector.broadcast %cst_6 : f32 to vector<16x128xf32>
    %11 = arith.subf %10, %9 : vector<16x128xf32>
    %12 = math.exp %11 : vector<16x128xf32>
    %cst_7 = arith.constant 1.000000e+00 : f32
    %13 = vector.broadcast %cst_7 : f32 to vector<16x128xf32>
    %14 = arith.addf %13, %12 : vector<16x128xf32>
    %15 = tpu.reciprocal %14 {approx = true} : vector<16x128xf32> -> vector<16x128xf32>
    %16 = arith.subf %8, %0 : vector<16x128xf32>
    %17 = arith.mulf %15, %16 : vector<16x128xf32>
    %18 = arith.addf %0, %17 : vector<16x128xf32>
    %c0_8 = arith.constant 0 : index
    %c0_9 = arith.constant 0 : index
    %19 = vector.load %arg4[%c0_8, %c0_9] : memref<16x128xf32, #tpu.memory_space<vmem>>, vector<16x128xf32>
    tpu.vector_store %arg4[%c0_8, %c0_9], %18 {strides = array<i32>} : memref<16x128xf32, #tpu.memory_space<vmem>>, vector<16x128xf32>,
    return
  }
  func.func @transform_0(%arg0: i32) -> (i32, i32) {
    %c0_i32 = arith.constant 0 : i32
    %c0_i32_0 = arith.constant 0 : i32
    return %arg0, %c0_i32 : i32, i32
  }
  func.func @transform_1(%arg0: i32) -> (i32, i32) {
    %c0_i32 = arith.constant 0 : i32
    %c0_i32_0 = arith.constant 0 : i32
    %c0_i32_1 = arith.constant 0 : i32
    return %c0_i32, %c0_i32_0 : i32, i32
  }
  func.func @transform_2(%arg0: i32) -> (i32, i32) {
    %c0_i32 = arith.constant 0 : i32
    %c0_i32_0 = arith.constant 0 : i32
    %c0_i32_1 = arith.constant 0 : i32
    return %c0_i32, %c0_i32_0 : i32, i32
  }
  func.func @transform_3(%arg0: i32) -> (i32, i32) {
    %c0_i32 = arith.constant 0 : i32
    %c0_i32_0 = arith.constant 0 : i32
    return %arg0, %c0_i32 : i32, i32
  }
}

</mosaic_0001>

<llo_original>
// kernel: tpu_custom_call.1
$region0: #{tpu_custom_call.1}
  #allocation0 [shape = 'u32[]', space=smem, size = 0x4, offset = 0x4, fixed_abs, tag = 'smem constant byte address 0x4 - core index']
  #allocation1 [shape = 'u32[144,128]{1,0:T(1,128)}', space=vmem, size = 0x12000, scoped, tag = 'internal scratch']
  %s0 = inlined_call_operand.hbm [shape: f32[16,128], index: 0, kind: input, shape index: {}]
  %s1 = inlined_call_operand.hbm [shape: f32[128,256], index: 1, kind: input, shape index: {}]
  %s2 = inlined_call_operand.vmem [shape: f32[1,256], index: 2, kind: input, shape index: {}]
  %s3 = inlined_call_operand.hbm [shape: f32[16,128], index: 3, kind: output, shape index: {}]
  %s4 = sld [smem:[#allocation0]]
  $region30: #{tpu_custom_call.1} parent=0
    _
  %s6 = ssub.s32 1, %s4
  %s7 = scalar_select 0, %s6, %s4
  $region1: #{tpu_custom_call.1} parent=0
    #allocation2 [shape = 'u8[8192]{0}', space=vmem, size = 0x2000, scoped, tag = 'input window, operand 0, single buffered']
    #allocation3 [shape = 's32[1]{0}', space=sflag, size = 0x4, scoped, tag = 'scoped memory for tpu_custom_call.1']
    #allocation4 [shape = 's32[1]{0}', space=sflag, size = 0x4, scoped, tag = 'scoped memory for tpu_custom_call.1']
    #allocation5 [shape = 'u8[131072]{0}', space=vmem, size = 0x20000, scoped, tag = 'input window, operand 1, single buffered']
    #allocation6 [shape = 's32[1]{0}', space=sflag, size = 0x4, scoped, tag = 'scoped memory for tpu_custom_call.1']
    #allocation7 [shape = 'u8[8192]{0}', space=vmem, size = 0x2000, scoped, tag = 'output window, operand 0, single buffered']
    %8 = vsyncpa [#allocation3], 0
    %9 = vsyncpa [#allocation6], 0
    %10 = vsyncpa [#allocation4], 0
    // Predicated region
    $region2: #{tpu_custom_call.1} parent=1 // pred_check
      _
    $region3: #{tpu_custom_call.1} parent=1 // pred_check_branch
      %12 = sbr.rel (0) target = $region5
    $region4: #{tpu_custom_call.1} parent=1 // pred_region
      %s14 = ssub.s32 256, 256
      %15 = vsyncadd [#allocation3], %s14
      %s16 = sshll.u32 [#allocation2], 4
      %s17 = int_to_ptr.vmem [resolvable:$true] %s16
      %22 = dma.hbm_to_vmem [thread:$0]  %s0, 256, %s17, [#allocation3], 128, 128, 8
    $region5: #{tpu_custom_call.1} parent=1 // pred_fallthru
      _
    // Predicated region
    $region6: #{tpu_custom_call.1} parent=1 // pred_check
      _
    $region7: #{tpu_custom_call.1} parent=1 // pred_check_branch
      %24 = sbr.rel (0) target = $region9
    $region8: #{tpu_custom_call.1} parent=1 // pred_region
      %s26 = ssub.s32 4096, 4096
      %27 = vsyncadd [#allocation6], %s26
      %s28 = sshll.u32 [#allocation5], 4
      %s29 = int_to_ptr.vmem [resolvable:$true] %s28
      %34 = dma.hbm_to_vmem [thread:$0]  %s1, 4096, %s29, [#allocation6], 256, 256, 16
    $region9: #{tpu_custom_call.1} parent=1 // pred_fallthru
      _
    // Predicated region
    $region10: #{tpu_custom_call.1} parent=1 // pred_check
      _
    $region11: #{tpu_custom_call.1} parent=1 // pred_check_branch
      %36 = sbr.rel (0) target = $region13
    $region12: #{tpu_custom_call.1} parent=1 // pred_region
      _
    $region13: #{tpu_custom_call.1} parent=1 // pred_fallthru
      _
    // Predicated region
    $region14: #{tpu_custom_call.1} parent=1 // pred_check
      _
    $region15: #{tpu_custom_call.1} parent=1 // pred_check_branch
      %38 = sbr.rel (0) target = $region17
    $region16: #{tpu_custom_call.1} parent=1 // pred_region
      %39 = dma.done [#allocation3], 256
    $region17: #{tpu_custom_call.1} parent=1 // pred_fallthru
      _
    // Predicated region
    $region18: #{tpu_custom_call.1} parent=1 // pred_check
      _
    $region19: #{tpu_custom_call.1} parent=1 // pred_check_branch
      %41 = sbr.rel (0) target = $region21
    $region20: #{tpu_custom_call.1} parent=1 // pred_region
      %42 = dma.done [#allocation6], 4096
    $region21: #{tpu_custom_call.1} parent=1 // pred_fallthru
      _
    %v43 = vld [vmem:[#allocation2] sm:$0xff]
    %v44 = vld [vmem:[#allocation2 + $0x8] sm:$0xff]
    %v45 = vld [vmem:[#allocation5] sm:$0xff]
    %v46 = vld [vmem:[#allocation5 + $0x8] sm:$0xff]
    %v47 = vld [vmem:[#allocation5 + $0x10] sm:$0xff]
    %v48 = vld [vmem:[#allocation5 + $0x18] sm:$0xff]
    %v49 = vld [vmem:[#allocation5 + $0x20] sm:$0xff]
    %v50 = vld [vmem:[#allocation5 + $0x28] sm:$0xff]
    %v51 = vld [vmem:[#allocation5 + $0x30] sm:$0xff]
    %v52 = vld [vmem:[#allocation5 + $0x38] sm:$0xff]
    %v53 = vld [vmem:[#allocation5 + $0x40] sm:$0xff]
    %v54 = vld [vmem:[#allocation5 + $0x48] sm:$0xff]
    %v55 = vld [vmem:[#allocation5 + $0x50] sm:$0xff]
    %v56 = vld [vmem:[#allocation5 + $0x58] sm:$0xff]
    %v57 = vld [vmem:[#allocation5 + $0x60] sm:$0xff]
    %v58 = vld [vmem:[#allocation5 + $0x68] sm:$0xff]
    %v59 = vld [vmem:[#allocation5 + $0x70] sm:$0xff]
    %v60 = vld [vmem:[#allocation5 + $0x78] sm:$0xff]
    %v61 = vld [vmem:[#allocation5 + $0x80] sm:$0xff]
    %v62 = vld [vmem:[#allocation5 + $0x88] sm:$0xff]
    %v63 = vld [vmem:[#allocation5 + $0x90] sm:$0xff]
    %v64 = vld [vmem:[#allocation5 + $0x98] sm:$0xff]
    %v65 = vld [vmem:[#allocation5 + $0xa0] sm:$0xff]
    %v66 = vld [vmem:[#allocation5 + $0xa8] sm:$0xff]
    %v67 = vld [vmem:[#allocation5 + $0xb0] sm:$0xff]
    %v68 = vld [vmem:[#allocation5 + $0xb8] sm:$0xff]
    %v69 = vld [vmem:[#allocation5 + $0xc0] sm:$0xff]
    %v70 = vld [vmem:[#allocation5 + $0xc8] sm:$0xff]
    %v71 = vld [vmem:[#allocation5 + $0xd0] sm:$0xff]
    %v72 = vld [vmem:[#allocation5 + $0xd8] sm:$0xff]
    %v73 = vld [vmem:[#allocation5 + $0xe0] sm:$0xff]
    %v74 = vld [vmem:[#allocation5 + $0xe8] sm:$0xff]
    %v75 = vld [vmem:[#allocation5 + $0xf0] sm:$0xff]
    %v76 = vld [vmem:[#allocation5 + $0xf8] sm:$0xff]
    %v77 = vld [vmem:[%s2] sm:$0x3]
    %v79 = vlaneseq
    %v80 = vshrl.u32 %v79, 7
    %v81 = vsub.s32 0, %v80
    %v82 = vrot.slane %v77, %v81
    %v83 = vlaneseq
    %v84 = vshrl.u32 %v83, 7
    %v85 = vsub.s32 1, %v84
    %v86 = vrot.slane %v77, %v85
    %89 = vmatprep.subr.mxu0 %v46
    %90 = vmatpush1.msra.mxu0 %v45
    %91 = vmatprep.subr.mxu0 %v48
    %92 = vmatpush1.msra.mxu0 %v47
    %93 = vmatprep.subr.mxu0 %v50
    %94 = vmatpush1.msra.mxu0 %v49
    %95 = vmatprep.subr.mxu0 %v52
    %96 = vmatpush1.msra.mxu0 %v51
    %97 = vmatprep.subr.mxu0 %v54
    %98 = vmatpush1.msra.mxu0 %v53
    %99 = vmatprep.subr.mxu0 %v56
    %100 = vmatpush1.msra.mxu0 %v55
    %101 = vmatprep.subr.mxu0 %v58
    %102 = vmatpush1.msra.mxu0 %v57
    %103 = vmatprep.subr.mxu0 %v60
    %104 = vmatpush1.msra.mxu0 %v59
    %105 = vmatprep.subr.mxu0 %v62
    %106 = vmatpush1.msra.mxu0 %v61
    %107 = vmatprep.subr.mxu0 %v64
    %108 = vmatpush1.msra.mxu0 %v63
    %109 = vmatprep.subr.mxu0 %v66
    %110 = vmatpush1.msra.mxu0 %v65
    %111 = vmatprep.subr.mxu0 %v68
    %112 = vmatpush1.msra.mxu0 %v67
    %113 = vmatprep.subr.mxu0 %v70
    %114 = vmatpush1.msra.mxu0 %v69
    %115 = vmatprep.subr.mxu0 %v72
    %116 = vmatpush1.msra.mxu0 %v71
    %117 = vmatprep.subr.mxu0 %v74
    %118 = vmatpush1.msra.mxu0 %v73
    %119 = vmatprep.subr.mxu0 %v76
    %120 = vmatpush1.msra.mxu0 %v75
    %121 = vmatprep.subr.mxu0 0.0
    %122 = vmatpush1.msra.mxu0 0.0
    %123 = vmatprep.subr.mxu0 0.0
    %124 = vmatpush1.msra.mxu0 0.0
    %125 = vmatprep.subr.mxu0 0.0
    %126 = vmatpush1.msra.mxu0 0.0
    %127 = vmatprep.subr.mxu0 0.0
    %128 = vmatpush1.msra.mxu0 0.0
    %129 = vmatprep.subr.mxu0 0.0
    %130 = vmatpush1.msra.mxu0 0.0
    %131 = vmatprep.subr.mxu0 0.0
    %132 = vmatpush1.msra.mxu0 0.0
    %133 = vmatprep.subr.mxu0 0.0
    %134 = vmatpush1.msra.mxu0 0.0
    %135 = vmatprep.subr.mxu0 0.0
    %136 = vmatpush1.msra.mxu0 0.0
    %137 = vmatprep.subr.mxu0 0.0
    %138 = vmatpush1.msra.mxu0 0.0
    %139 = vmatprep.subr.mxu0 0.0
    %140 = vmatpush1.msra.mxu0 0.0
    %141 = vmatprep.subr.mxu0 0.0
    %142 = vmatpush1.msra.mxu0 0.0
    %143 = vmatprep.subr.mxu0 0.0
    %144 = vmatpush1.msra.mxu0 0.0
    %145 = vmatprep.subr.mxu0 0.0
    %146 = vmatpush1.msra.mxu0 0.0
    %147 = vmatprep.subr.mxu0 0.0
    %148 = vmatpush1.msra.mxu0 0.0
    %149 = vmatprep.subr.mxu0 0.0
    %150 = vmatpush1.msra.mxu0 0.0
    %151 = vmatprep.subr.mxu0 0.0
    %152 = vmatpush1.msra.mxu0 0.0
    %153 = vmatprep.mubr.f32.mxu0 0.0
    %154 = vmatmul.mubr.f32.gmra.mrb[0].mxu0 %v43
    %v155 = vpop.f32.mrb[0].mxu0
    %v156 = vadd.f32 %v82, %v155
    %v157 = vpop.f32.mrb[0].mxu0
    %v158 = vadd.f32 %v86, %v157
    %159 = vmatprep.mubr.f32.mxu0 0.0
    %160 = vmatmul.mubr.f32.gmra.mrb[0].mxu0 %v44
    %v161 = vpop.f32.mrb[0].mxu0
    %v162 = vadd.f32 %v82, %v161
    %v163 = vpop.f32.mrb[0].mxu0
    %v164 = vadd.f32 %v86, %v163
    %165 = vdwg.mxu0
    %v166 = vmax.f32 %v156, 0.0
    %v167 = vmax.f32 %v162, 0.0
    %v168 = vsub.f32 0.0, %v158
    %v169 = vsub.f32 0.0, %v164
    %v170 = vmul.f32 %v168, 1.442695
    %v171 = vpow.pop %v170
    %v172 = vmul.f32 %v169, 1.442695
    %v173 = vpow.pop %v172
    %v174 = vadd.f32 %v171, 1.0
    %v175 = vadd.f32 %v173, 1.0
    %v176 = vrcp.pop %v174
    %v177 = vrcp.pop %v175
    %v178 = vsub.f32 %v166, %v43
    %v179 = vsub.f32 %v167, %v44
    %v180 = vmul.f32 %v176, %v178
    %v181 = vmul.f32 %v177, %v179
    %v182 = vadd.f32 %v43, %v180
    %v183 = vadd.f32 %v44, %v181
    %184 = vst [vmem:[#allocation7] sm:$0xff] %v182
    %185 = vst [vmem:[#allocation7 + $0x8] sm:$0xff] %v183
    // Predicated region
    $region22: #{tpu_custom_call.1} parent=1 // pred_check
      _
    $region23: #{tpu_custom_call.1} parent=1 // pred_check_branch
      %187 = sbr.rel (0) target = $region25
    $region24: #{tpu_custom_call.1} parent=1 // pred_region
      %s189 = ssub.s32 256, 256
      %190 = vsyncadd [#allocation4], %s189
      %s191 = sshll.u32 [#allocation7], 4
      %s192 = int_to_ptr.vmem [resolvable:$true] %s191
      %197 = dma.vmem_to_hbm [thread:$0]  %s192, 256, %s3, [#allocation4], 128, 128, 8
    $region25: #{tpu_custom_call.1} parent=1 // pred_fallthru
      _
    // Predicated region
    $region26: #{tpu_custom_call.1} parent=1 // pred_check
      _
    $region27: #{tpu_custom_call.1} parent=1 // pred_check_branch
      %199 = sbr.rel (0) target = $region29
    $region28: #{tpu_custom_call.1} parent=1 // pred_region
      %200 = dma.done [#allocation4], 256
    $region29: #{tpu_custom_call.1} parent=1 // pred_fallthru
      _
    %201 = vsyncpa [#allocation3], 1
    %202 = vsyncpa [#allocation6], 1
    %203 = vsyncpa [#allocation4], 1

</llo_original>
